<compile_context>
chip_gen: v5e
topology: v5e:2x2
jax: 0.10.0
libtpu: 0.0.40
codegen_flags: <defaults>
</compile_context>

<pallas_src>
import functools

import jax
import jax.numpy as jnp
from jax.experimental import pallas as pl
from jax.experimental.pallas import tpu as pltpu

EPS = 1e-5


def metacaru_kernel(img_ref, meta_ref, w_ref, gamma_ref, beta_ref, out_ref, *, tn):
    img = img_ref[...]          # (B, tn)      current feature tile of the image
    meta = meta_ref[...]        # (B, D_meta)  replicated across the grid

    # Single MXU pass covering both Fm and Gm projections for this feature tile.
    # (Linear biases omitted: BN's batch-mean subtraction cancels them exactly.)
    pre = jnp.dot(meta, w_ref[...], preferred_element_type=jnp.float32)  # (B, 2*tn)

    # Training-mode BatchNorm1d: batch mean, biased batch variance, eps=1e-5,
    # affine folded into one per-feature scale so the per-element work is a
    # single multiply-add.
    mean = jnp.mean(pre, axis=0, keepdims=True)          # (1, 2*tn)
    xc = pre - mean
    var = jnp.mean(xc * xc, axis=0, keepdims=True)       # biased variance
    scale = gamma_ref[...] * jax.lax.rsqrt(var + EPS)    # (1, 2*tn)
    bn = xc * scale + beta_ref[...]                      # (B, 2*tn)

    fm = bn[:, :tn]             # Fm(meta) for this tile
    gm = bn[:, tn:]             # Gm(meta) for this tile

    # CARU combination.
    n = jnp.tanh(img + fm)
    z = jax.nn.sigmoid(gm + img)
    l = jax.nn.sigmoid(fm) * z
    out_ref[...] = ((1.0 - l) * img + l * n).astype(out_ref.dtype)


def metacaru_forward(img, meta, params, *, tile=512):
    """img: (B, D_img) f32, meta: (B, D_meta) f32 -> (B, D_img) f32."""
    B, D_img = img.shape
    _, D_meta = meta.shape

    # Lane-dense feature tile: a multiple of 128 that divides D_img, else full D_img.
    if D_img % 128 == 0:
        tile = max(128, (tile // 128) * 128)
        tn = min(tile, D_img)
        while D_img % tn != 0:
            tn -= 128
    else:
        tn = D_img
    nt = D_img // tn

    # Pack both projections so feature tile j holds [Fm tile j | Gm tile j]
    # contiguously -> one matmul per grid step. BN params packed identically.
    def pack_features(a, b):
        lead = a.shape[:-1]
        a = a.reshape(*lead, nt, tn)
        b = b.reshape(*lead, nt, tn)
        return jnp.concatenate([a, b], axis=-1).reshape(*lead, 2 * D_img)

    w_cat = pack_features(params["wf_t"], params["wg_t"])          # (D_meta, 2*D_img)
    gamma_cat = pack_features(params["gamma_f"], params["gamma_g"])  # (1, 2*D_img)
    beta_cat = pack_features(params["beta_f"], params["beta_g"])     # (1, 2*D_img)
    # NOTE: bf / bg are intentionally not passed -- cancelled by BN mean subtraction.

    kernel = functools.partial(metacaru_kernel, tn=tn)
    return pl.pallas_call(
        kernel,
        out_shape=jax.ShapeDtypeStruct((B, D_img), jnp.float32),
        grid_spec=pltpu.PrefetchScalarGridSpec(
            num_scalar_prefetch=0,
            grid=(nt,),
            in_specs=[
                pl.BlockSpec((B, tn), lambda j: (0, j)),             # img tile
                pl.BlockSpec((B, D_meta), lambda j: (0, 0)),         # meta (replicated)
                pl.BlockSpec((D_meta, 2 * tn), lambda j: (0, j)),    # packed weights
                pl.BlockSpec((1, 2 * tn), lambda j: (0, j)),         # packed gamma
                pl.BlockSpec((1, 2 * tn), lambda j: (0, j)),         # packed beta
            ],
            out_specs=pl.BlockSpec((B, tn), lambda j: (0, j)),
        ),
        compiler_params=pltpu.CompilerParams(
            dimension_semantics=("parallel",),     # megacore sharding on v7x
            vmem_limit_bytes=32 * 1024 * 1024,     # > v5e's 16 MiB default, safe everywhere
        ),
    )(img, meta, w_cat, gamma_cat, beta_cat)


def init_params(key, d_img, d_meta):
    """PyTorch-style init: Linear weight (out,in) ~ U(-k,k), k=1/sqrt(in), stored
    transposed as (in,out); bias ~ U(-k,k); BN gamma=1, beta=0."""
    kf_w, kf_b, kg_w, kg_b = jax.random.split(key, 4)
    bound = 1.0 / jnp.sqrt(d_meta)
    wf = jax.random.uniform(kf_w, (d_img, d_meta), jnp.float32, -bound, bound)
    bf = jax.random.uniform(kf_b, (d_img,), jnp.float32, -bound, bound)
    wg = jax.random.uniform(kg_w, (d_img, d_meta), jnp.float32, -bound, bound)
    bg = jax.random.uniform(kg_b, (d_img,), jnp.float32, -bound, bound)
    return {
        "wf_t": wf.T,                               # (D_meta, D_img)
        "bf": bf.reshape(1, d_img),
        "gamma_f": jnp.ones((1, d_img), jnp.float32),
        "beta_f": jnp.zeros((1, d_img), jnp.float32),
        "wg_t": wg.T,
        "bg": bg.reshape(1, d_img),
        "gamma_g": jnp.ones((1, d_img), jnp.float32),
        "beta_g": jnp.zeros((1, d_img), jnp.float32),
    }


def _bn_train_ref(x, gamma, beta):
    mean = jnp.mean(x, axis=0, keepdims=True)
    xc = x - mean
    var = jnp.mean(xc * xc, axis=0, keepdims=True)
    return gamma * (xc * jax.lax.rsqrt(var + EPS)) + beta


def reference_forward(img, meta, params):
    """Pure-JAX mirror of the PyTorch forward (training-mode BN, bias included)."""
    fm = _bn_train_ref(meta @ params["wf_t"] + params["bf"],
                       params["gamma_f"], params["beta_f"])
    gm = _bn_train_ref(meta @ params["wg_t"] + params["bg"],
                       params["gamma_g"], params["beta_g"])
    p = fm
    n = jnp.tanh(img + p)
    z = jax.nn.sigmoid(gm + img)
    l = jax.nn.sigmoid(p) * z
    return (1.0 - l) * img + l * n


if __name__ == "__main__":
    B, D_META, D_IMG = 8, 32, 256   # small, lane/sublane-friendly test shapes

    key = jax.random.PRNGKey(0)
    k_img, k_meta, k_param = jax.random.split(key, 3)
    img = jax.random.normal(k_img, (B, D_IMG), jnp.float32)
    meta = jax.random.normal(k_meta, (B, D_META), jnp.float32)
    params = init_params(k_param, D_IMG, D_META)

    # tile=128 -> 2-step feature grid even at this toy size (exercises pipelining);
    # production sizes would use the default 512-lane tile.
    out = metacaru_forward(img, meta, params, tile=128)
    out = jax.block_until_ready(out)

    ref = reference_forward(img, meta, params)
    assert out.shape == (B, D_IMG)
    max_err = float(jnp.max(jnp.abs(out - ref)))
    assert jnp.allclose(out, ref, atol=1e-5, rtol=1e-5), f"mismatch vs reference: {max_err}"

    print("KERNEL_OK")
</pallas_src>

<mosaic_0001>
module attributes {stable_mosaic.version = 11 : i64} {
  func.func @metacaru_kernel(%arg0: i32, %arg1: memref<8x128xf32, #tpu.memory_space<vmem>>, %arg2: memref<8x32xf32, #tpu.memory_space<vmem>>, %arg3: memref<32x256xf32, #tpu.memory_space<vmem>>, %arg4: memref<1x256xf32, #tpu.memory_space<vmem>>, %arg5: memref<1x256xf32, #tpu.memory_space<vmem>>, %arg6: memref<8x128xf32, #tpu.memory_space<vmem>>) attributes {dimension_semantics = [#tpu.dimension_semantics<parallel>], iteration_bounds = array<i64: 2>, scalar_prefetch = 0 : i64, scratch_operands = 0 : i64, tpu.core_type = #tpu.core_type<tc>, window_params = [{transform_indices = @transform_0, window_bounds = array<i64: 8, 128>}, {pipeline_mode = #tpu.pipeline_mode<synchronous>, transform_indices = @transform_1, window_bounds = array<i64: 8, 32>}, {transform_indices = @transform_2, window_bounds = array<i64: 32, 256>}, {transform_indices = @transform_3, window_bounds = array<i64: 1, 256>}, {transform_indices = @transform_4, window_bounds = array<i64: 1, 256>}, {transform_indices = @transform_5, window_bounds = array<i64: 8, 128>}]} {
    %c0 = arith.constant 0 : index
    %c0_0 = arith.constant 0 : index
    %0 = vector.load %arg1[%c0, %c0_0] : memref<8x128xf32, #tpu.memory_space<vmem>>, vector<8x128xf32>
    %c0_1 = arith.constant 0 : index
    %c0_2 = arith.constant 0 : index
    %1 = vector.load %arg2[%c0_1, %c0_2] : memref<8x32xf32, #tpu.memory_space<vmem>>, vector<8x32xf32>
    %c0_3 = arith.constant 0 : index
    %c0_4 = arith.constant 0 : index
    %2 = vector.load %arg3[%c0_3, %c0_4] : memref<32x256xf32, #tpu.memory_space<vmem>>, vector<32x256xf32>
    %cst = arith.constant dense<0.000000e+00> : vector<8x256xf32>
    %3 = tpu.matmul %1, %2, %cst {dimension_numbers = #tpu.dot_dimension_numbers<[1], [0], [0], [1], [0, 0, 1, 1], [], []>} : vector<8x32xf32>, vector<32x256xf32>, vector<8x256xf32> -> vector<8x256xf32>
    %cst_5 = arith.constant dense<0.000000e+00> : vector<256xf32>
    %4 = vector.multi_reduction <add>, %3, %cst_5 [0] : vector<8x256xf32> to vector<256xf32>
    %5 = vector.shape_cast %4 : vector<256xf32> to vector<1x256xf32>
    %cst_6 = arith.constant 8.000000e+00 : f32
    %6 = vector.broadcast %cst_6 : f32 to vector<1x256xf32>
    %7 = arith.divf %5, %6 : vector<1x256xf32>
    %8 = vector.broadcast %7 : vector<1x256xf32> to vector<8x256xf32>
    %9 = arith.subf %3, %8 : vector<8x256xf32>
    %10 = arith.mulf %9, %9 : vector<8x256xf32>
    %cst_7 = arith.constant dense<0.000000e+00> : vector<256xf32>
    %11 = vector.multi_reduction <add>, %10, %cst_7 [0] : vector<8x256xf32> to vector<256xf32>
    %12 = vector.shape_cast %11 : vector<256xf32> to vector<1x256xf32>
    %cst_8 = arith.constant 8.000000e+00 : f32
    %13 = vector.broadcast %cst_8 : f32 to vector<1x256xf32>
    %14 = arith.divf %12, %13 : vector<1x256xf32>
    %c0_9 = arith.constant 0 : index
    %c0_10 = arith.constant 0 : index
    %15 = vector.load %arg4[%c0_9, %c0_10] : memref<1x256xf32, #tpu.memory_space<vmem>>, vector<1x256xf32>
    %cst_11 = arith.constant 9.99999974E-6 : f32
    %16 = vector.broadcast %cst_11 : f32 to vector<1x256xf32>
    %17 = arith.addf %14, %16 : vector<1x256xf32>
    %18 = math.rsqrt %17 : vector<1x256xf32>
    %19 = arith.mulf %15, %18 : vector<1x256xf32>
    %20 = vector.broadcast %19 : vector<1x256xf32> to vector<8x256xf32>
    %21 = arith.mulf %9, %20 : vector<8x256xf32>
    %c0_12 = arith.constant 0 : index
    %c0_13 = arith.constant 0 : index
    %22 = vector.load %arg5[%c0_12, %c0_13] : memref<1x256xf32, #tpu.memory_space<vmem>>, vector<1x256xf32>
    %23 = vector.broadcast %22 : vector<1x256xf32> to vector<8x256xf32>
    %24 = arith.addf %21, %23 : vector<8x256xf32>
    %25 = vector.extract_strided_slice %24 {offsets = [0, 0], sizes = [8, 128], strides = [1, 1]} : vector<8x256xf32> to vector<8x128xf32>
    %26 = vector.extract_strided_slice %24 {offsets = [0, 128], sizes = [8, 128], strides = [1, 1]} : vector<8x256xf32> to vector<8x128xf32>
    %27 = arith.addf %0, %25 : vector<8x128xf32>
    %28 = math.tanh %27 : vector<8x128xf32>
    %29 = arith.addf %26, %0 : vector<8x128xf32>
    %30 = arith.negf %29 : vector<8x128xf32>
    %31 = math.exp %30 : vector<8x128xf32>
    %cst_14 = arith.constant 1.000000e+00 : f32
    %32 = vector.broadcast %cst_14 : f32 to vector<8x128xf32>
    %33 = arith.addf %32, %31 : vector<8x128xf32>
    %34 = arith.divf %32, %33 : vector<8x128xf32>
    %35 = arith.negf %25 : vector<8x128xf32>
    %36 = math.exp %35 : vector<8x128xf32>
    %cst_15 = arith.constant 1.000000e+00 : f32
    %37 = vector.broadcast %cst_15 : f32 to vector<8x128xf32>
    %38 = arith.addf %37, %36 : vector<8x128xf32>
    %39 = arith.divf %37, %38 : vector<8x128xf32>
    %40 = arith.mulf %39, %34 : vector<8x128xf32>
    %cst_16 = arith.constant 1.000000e+00 : f32
    %41 = vector.broadcast %cst_16 : f32 to vector<8x128xf32>
    %42 = arith.subf %41, %40 : vector<8x128xf32>
    %43 = arith.mulf %42, %0 : vector<8x128xf32>
    %44 = arith.mulf %40, %28 : vector<8x128xf32>
    %45 = arith.addf %43, %44 : vector<8x128xf32>
    %c0_17 = arith.constant 0 : index
    %c0_18 = arith.constant 0 : index
    %46 = vector.load %arg6[%c0_17, %c0_18] : memref<8x128xf32, #tpu.memory_space<vmem>>, vector<8x128xf32>
    tpu.vector_store %arg6[%c0_17, %c0_18], %45 {strides = array<i32>} : memref<8x128xf32, #tpu.memory_space<vmem>>, vector<8x128xf32>,
    return
  }
  func.func @transform_0(%arg0: i32) -> (i32, i32) {
    %c0_i32 = arith.constant 0 : i32
    %c0_i32_0 = arith.constant 0 : i32
    return %c0_i32, %arg0 : i32, i32
  }
  func.func @transform_1(%arg0: i32) -> (i32, i32) {
    %c0_i32 = arith.constant 0 : i32
    %c0_i32_0 = arith.constant 0 : i32
    %c0_i32_1 = arith.constant 0 : i32
    return %c0_i32, %c0_i32_0 : i32, i32
  }
  func.func @transform_2(%arg0: i32) -> (i32, i32) {
    %c0_i32 = arith.constant 0 : i32
    %c0_i32_0 = arith.constant 0 : i32
    return %c0_i32, %arg0 : i32, i32
  }
  func.func @transform_3(%arg0: i32) -> (i32, i32) {
    %c0_i32 = arith.constant 0 : i32
    %c0_i32_0 = arith.constant 0 : i32
    return %c0_i32, %arg0 : i32, i32
  }
  func.func @transform_4(%arg0: i32) -> (i32, i32) {
    %c0_i32 = arith.constant 0 : i32
    %c0_i32_0 = arith.constant 0 : i32
    return %c0_i32, %arg0 : i32, i32
  }
  func.func @transform_5(%arg0: i32) -> (i32, i32) {
    %c0_i32 = arith.constant 0 : i32
    %c0_i32_0 = arith.constant 0 : i32
    return %c0_i32, %arg0 : i32, i32
  }
}

</mosaic_0001>

<llo_original>
// kernel: tpu_custom_call.1
$region0: #{tpu_custom_call.1}
  #allocation0 [shape = 'u32[]', space=smem, size = 0x4, offset = 0x4, fixed_abs, tag = 'smem constant byte address 0x4 - core index']
  #allocation1 [shape = 'u32[72,128]{1,0:T(1,128)}', space=vmem, size = 0x9000, scoped, tag = 'internal scratch']
  %s0 = inlined_call_operand.hbm [shape: f32[8,256], index: 0, kind: input, shape index: {}]
  %s1 = inlined_call_operand.hbm [shape: f32[8,32], index: 1, kind: input, shape index: {}]
  %s2 = inlined_call_operand.hbm [shape: f32[32,512], index: 2, kind: input, shape index: {}]
  %s3 = inlined_call_operand.hbm [shape: f32[1,512], index: 3, kind: input, shape index: {}]
  %s4 = inlined_call_operand.hbm [shape: f32[1,512], index: 4, kind: input, shape index: {}]
  %s5 = inlined_call_operand.hbm [shape: f32[8,256], index: 5, kind: output, shape index: {}]
  %s6 = sld [smem:[#allocation0]]
  $region73: #{tpu_custom_call.1} parent=0
    _
  %s8 = ssub.s32 1, %s6
  %s9 = scalar_select 0, %s8, %s6
  $region1: #{tpu_custom_call.1} parent=0
    #allocation2 [shape = 'u8[8192]{0}', space=vmem, size = 0x2000, scoped, tag = 'input window, operand 0']
    #allocation3 [shape = 's32[2]{0}', space=sflag, size = 0x8, scoped, tag = 'scoped memory for tpu_custom_call.1']
    #allocation4 [shape = 's32[2]{0}', space=sflag, size = 0x8, scoped, tag = 'scoped memory for tpu_custom_call.1']
    #allocation5 [shape = 'u8[4096]{0}', space=vmem, size = 0x1000, scoped, tag = 'input window, operand 1, single buffered']
    #allocation6 [shape = 's32[1]{0}', space=sflag, size = 0x4, scoped, tag = 'scoped memory for tpu_custom_call.1']
    #allocation7 [shape = 'u8[65536]{0}', space=vmem, size = 0x10000, scoped, tag = 'input window, operand 2']
    #allocation8 [shape = 'u8[2048]{0}', space=vmem, size = 0x800, scoped, tag = 'input window, operand 3']
    #allocation9 [shape = 'u8[2048]{0}', space=vmem, size = 0x800, scoped, tag = 'input window, operand 4']
    #allocation10 [shape = 'u8[8192]{0}', space=vmem, size = 0x2000, scoped, tag = 'output window, operand 0']
    %10 = vsyncpa [#allocation3], 0
    %s11 = scalar_lea.sflag [#allocation3], 1
    %12 = vsyncpa %s11, 0
    %13 = vsyncpa [#allocation6], 0
    %14 = vsyncpa [#allocation4], 0
    %s15 = scalar_lea.sflag [#allocation4], 1
    %16 = vsyncpa %s15, 0
    loop: start=0, step=1, limit=4
    $region2: #{tpu_custom_call.1} parent=1 // loop_pre_header
      _
    $region3: #{tpu_custom_call.1} parent=1 // loop_header
      %s18 = sphi 0, %s22
      %p19 = scmp.ge.s32.totalorder %s18, 4
      %s28 = sphi 0, %s30
      %s31 = sphi 0, %s28
      %s32 = sphi 0, %s31
      %s48 = sphi 0, %s32
      %s52 = sphi 0, %s52
      %s54 = sphi 0, %s52
      %s55 = sphi 0, %s54
      %s69 = sphi 0, %s55
      %s75 = sphi 0, %s77
      %s78 = sphi 0, %s75
      %s79 = sphi 0, %s78
      %s95 = sphi 0, %s79
      %s101 = sphi 0, %s103
      %s104 = sphi 0, %s101
      %s105 = sphi 0, %s104
      %s121 = sphi 0, %s105
      %s127 = sphi 0, %s129
      %s130 = sphi 0, %s127
      %s131 = sphi 0, %s130
      %s147 = sphi 0, %s131
      %s153 = sphi 0, %s155
      %s156 = sphi 0, %s153
      %s157 = sphi 0, %s156
      %s173 = sphi 0, %s157
    $region4: #{tpu_custom_call.1} parent=1 // loop_header_branch
      %21 = sbr.rel (%p19) target = $region8
    $region5: #{tpu_custom_call.1} parent=1 // loop_body
      %s23 = ssub.s32 %s18, 1
      %s24 = ssub.s32 %s18, 2
      %s25 = sadd.s32 %s18, 1
      %s26 = ssub.s32 %s18, %s25
      %p27 = scmp.eq.s32.totalorder %s26, 0
      %s29 = sadd.s32 %s28, 1
      %s30 = scalar_select %p27, %s28, %s29
      %p33 = pneg %p27
      %p34 = scmp.eq.s32.totalorder %s18, 1
      %p35 = por %p33, %p34
      %p36 = scmp.ne.s32.totalorder %s28, %s31
      %p37 = scmp.eq.s32.totalorder %s18, 0
      %p38 = por %p36, %p37
      %p39 = scmp.ne.s32.totalorder %s28, %s31
      %p40 = scmp.eq.s32.totalorder %s23, 1
      %p41 = por %p39, %p40
      %p42 = scmp.ne.s32.totalorder %s31, %s32
      %p43 = scmp.eq.s32.totalorder %s23, 0
      %p44 = por %p42, %p43
      %p45 = scmp.ne.s32.totalorder %s31, %s32
      %p46 = scmp.eq.s32.totalorder %s24, 1
      %p47 = por %p45, %p46
      %p49 = scmp.ne.s32.totalorder %s32, %s48
      %p50 = scmp.eq.s32.totalorder %s24, 0
      %p51 = por %p49, %p50
      %s53 = sadd.s32 %s52, 1
      %p56 = scmp.eq.s32.totalorder %s18, 1
      %p57 = scmp.ne.s32.totalorder %s52, %s54
      %p58 = scmp.eq.s32.totalorder %s18, 0
      %p59 = por %p57, %p58
      %p60 = scmp.ne.s32.totalorder %s52, %s54
      %p61 = scmp.eq.s32.totalorder %s23, 1
      %p62 = por %p60, %p61
      %p63 = scmp.ne.s32.totalorder %s54, %s55
      %p64 = scmp.eq.s32.totalorder %s23, 0
      %p65 = por %p63, %p64
      %p66 = scmp.ne.s32.totalorder %s54, %s55
      %p67 = scmp.eq.s32.totalorder %s24, 1
      %p68 = por %p66, %p67
      %p70 = scmp.ne.s32.totalorder %s55, %s69
      %p71 = scmp.eq.s32.totalorder %s24, 0
      %p72 = por %p70, %p71
      %s73 = ssub.s32 %s18, %s25
      %p74 = scmp.eq.s32.totalorder %s73, 0
      %s76 = sadd.s32 %s75, 1
      %s77 = scalar_select %p74, %s75, %s76
      %p80 = pneg %p74
      %p81 = scmp.eq.s32.totalorder %s18, 1
      %p82 = por %p80, %p81
      %p83 = scmp.ne.s32.totalorder %s75, %s78
      %p84 = scmp.eq.s32.totalorder %s18, 0
      %p85 = por %p83, %p84
      %p86 = scmp.ne.s32.totalorder %s75, %s78
      %p87 = scmp.eq.s32.totalorder %s23, 1
      %p88 = por %p86, %p87
      %p89 = scmp.ne.s32.totalorder %s78, %s79
      %p90 = scmp.eq.s32.totalorder %s23, 0
      %p91 = por %p89, %p90
      %p92 = scmp.ne.s32.totalorder %s78, %s79
      %p93 = scmp.eq.s32.totalorder %s24, 1
      %p94 = por %p92, %p93
      %p96 = scmp.ne.s32.totalorder %s79, %s95
      %p97 = scmp.eq.s32.totalorder %s24, 0
      %p98 = por %p96, %p97
      %s99 = ssub.s32 %s18, %s25
      %p100 = scmp.eq.s32.totalorder %s99, 0
      %s102 = sadd.s32 %s101, 1
      %s103 = scalar_select %p100, %s101, %s102
      %p106 = pneg %p100
      %p107 = scmp.eq.s32.totalorder %s18, 1
      %p108 = por %p106, %p107
      %p109 = scmp.ne.s32.totalorder %s101, %s104
      %p110 = scmp.eq.s32.totalorder %s18, 0
      %p111 = por %p109, %p110
      %p112 = scmp.ne.s32.totalorder %s101, %s104
      %p113 = scmp.eq.s32.totalorder %s23, 1
      %p114 = por %p112, %p113
      %p115 = scmp.ne.s32.totalorder %s104, %s105
      %p116 = scmp.eq.s32.totalorder %s23, 0
      %p117 = por %p115, %p116
      %p118 = scmp.ne.s32.totalorder %s104, %s105
      %p119 = scmp.eq.s32.totalorder %s24, 1
      %p120 = por %p118, %p119
      %p122 = scmp.ne.s32.totalorder %s105, %s121
      %p123 = scmp.eq.s32.totalorder %s24, 0
      %p124 = por %p122, %p123
      %s125 = ssub.s32 %s18, %s25
      %p126 = scmp.eq.s32.totalorder %s125, 0
      %s128 = sadd.s32 %s127, 1
      %s129 = scalar_select %p126, %s127, %s128
      %p132 = pneg %p126
      %p133 = scmp.eq.s32.totalorder %s18, 1
      %p134 = por %p132, %p133
      %p135 = scmp.ne.s32.totalorder %s127, %s130
      %p136 = scmp.eq.s32.totalorder %s18, 0
      %p137 = por %p135, %p136
      %p138 = scmp.ne.s32.totalorder %s127, %s130
      %p139 = scmp.eq.s32.totalorder %s23, 1
      %p140 = por %p138, %p139
      %p141 = scmp.ne.s32.totalorder %s130, %s131
      %p142 = scmp.eq.s32.totalorder %s23, 0
      %p143 = por %p141, %p142
      %p144 = scmp.ne.s32.totalorder %s130, %s131
      %p145 = scmp.eq.s32.totalorder %s24, 1
      %p146 = por %p144, %p145
      %p148 = scmp.ne.s32.totalorder %s131, %s147
      %p149 = scmp.eq.s32.totalorder %s24, 0
      %p150 = por %p148, %p149
      %s151 = ssub.s32 %s18, %s25
      %p152 = scmp.eq.s32.totalorder %s151, 0
      %s154 = sadd.s32 %s153, 1
      %s155 = scalar_select %p152, %s153, %s154
      %p158 = pneg %p152
      %p159 = scmp.eq.s32.totalorder %s18, 1
      %p160 = por %p158, %p159
      %p161 = scmp.ne.s32.totalorder %s153, %s156
      %p162 = scmp.eq.s32.totalorder %s18, 0
      %p163 = por %p161, %p162
      %p164 = scmp.ne.s32.totalorder %s153, %s156
      %p165 = scmp.eq.s32.totalorder %s23, 1
      %p166 = por %p164, %p165
      %p167 = scmp.ne.s32.totalorder %s156, %s157
      %p168 = scmp.eq.s32.totalorder %s23, 0
      %p169 = por %p167, %p168
      %p170 = scmp.ne.s32.totalorder %s156, %s157
      %p171 = scmp.eq.s32.totalorder %s24, 1
      %p172 = por %p170, %p171
      %p174 = scmp.ne.s32.totalorder %s157, %s173
      %p175 = scmp.eq.s32.totalorder %s24, 0
      %p176 = por %p174, %p175
      %p177 = scmp.le.s32.totalorder 1, %s18
      %p178 = scmp.lt.s32.totalorder %s18, 3
      %p179 = pnand %p177, %p178
      %p180 = pneg %p179
      // Predicated region
      $region9: #{tpu_custom_call.1} parent=5 // pred_check
        _
      $region10: #{tpu_custom_call.1} parent=5 // pred_check_branch
        %182 = sbr.rel (%p179) target = $region12
      $region11: #{tpu_custom_call.1} parent=5 // pred_region
        %s183 = ssub.s32 %s18, 1
        // Predicated region
        $region13: #{tpu_custom_call.1} parent=11 // pred_check
          %p184 = pneg %p65
        $region14: #{tpu_custom_call.1} parent=11 // pred_check_branch
          %186 = sbr.rel (%p184) target = $region16
        $region15: #{tpu_custom_call.1} parent=11 // pred_region
          %188 = vsyncadd [#allocation6], 0
          %s190 = sshll.u32 %s1, 4
          %s191 = int_to_ptr.hbm [resolvable:$true] %s190
          %s192 = sshll.u32 [#allocation5], 4
          %s193 = int_to_ptr.vmem [resolvable:$true] %s192
          %195 = dma.hbm_to_vmem [thread:$0]  %s191, 128, %s193, [#allocation6]
        $region16: #{tpu_custom_call.1} parent=11 // pred_fallthru
          _
      $region12: #{tpu_custom_call.1} parent=5 // pred_fallthru
        _
      %p196 = scmp.lt.s32.totalorder %s18, 2
      // Predicated region
      $region17: #{tpu_custom_call.1} parent=5 // pred_check
        %p197 = pneg %p196
      $region18: #{tpu_custom_call.1} parent=5 // pred_check_branch
        %199 = sbr.rel (%p197) target = $region20
      $region19: #{tpu_custom_call.1} parent=5 // pred_region
        // Predicated region
        $region21: #{tpu_custom_call.1} parent=19 // pred_check
          %p200 = pneg %p38
        $region22: #{tpu_custom_call.1} parent=19 // pred_check_branch
          %202 = sbr.rel (%p200) target = $region24
        $region23: #{tpu_custom_call.1} parent=19 // pred_region
          %s203 = sand.u32 %s18, 1
          %s204 = scalar_lea.sflag [#allocation3], %s203
          %s205 = sand.u32 %s28, 1
          %s206 = smul.addr %s205, 8
          %s207 = scalar_lea.vmem [#allocation2], %s206
          %209 = vsyncadd %s204, 0
          %s210 = smul.addr %s18, 8
          %s211 = scalar_lea.hbm %s0, %s210
          %s213 = sshll.u32 %s211, 4
          %s214 = int_to_ptr.hbm [resolvable:$true] %s213
          %s215 = sshll.u32 %s207, 4
          %s216 = int_to_ptr.vmem [resolvable:$true] %s215
          %218 = dma.hbm_to_vmem [thread:$0]  %s214, 128, %s216, %s204
        $region24: #{tpu_custom_call.1} parent=19 // pred_fallthru
          _
        // Predicated region
        $region25: #{tpu_custom_call.1} parent=19 // pred_check
          %p219 = pneg %p85
        $region26: #{tpu_custom_call.1} parent=19 // pred_check_branch
          %221 = sbr.rel (%p219) target = $region28
        $region27: #{tpu_custom_call.1} parent=19 // pred_region
          %s222 = sand.u32 %s18, 1
          %s223 = scalar_lea.sflag [#allocation3], %s222
          %s224 = sand.u32 %s75, 1
          %s225 = smul.addr %s224, 64
          %s226 = scalar_lea.vmem [#allocation7], %s225
          %s227 = smul.u32 2, %s18
          %229 = vsyncadd %s223, 0
          %s230 = smul.addr %s227, 8
          %s231 = scalar_lea.hbm %s2, %s230
          %s232 = sshll.u32 %s231, 4
          %s233 = int_to_ptr.hbm [resolvable:$true] %s232
          %s234 = sshll.u32 %s226, 4
          %s235 = int_to_ptr.vmem [resolvable:$true] %s234
          %240 = dma.hbm_to_vmem [thread:$0]  %s233, 1024, %s235, %s223, 512, 256, 16
        $region28: #{tpu_custom_call.1} parent=19 // pred_fallthru
          _
        // Predicated region
        $region29: #{tpu_custom_call.1} parent=19 // pred_check
          %p241 = pneg %p111
        $region30: #{tpu_custom_call.1} parent=19 // pred_check_branch
          %243 = sbr.rel (%p241) target = $region32
        $region31: #{tpu_custom_call.1} parent=19 // pred_region
          %s244 = sand.u32 %s18, 1
          %s245 = scalar_lea.sflag [#allocation3], %s244
          %s246 = sand.u32 %s101, 1
          %s247 = smul.addr %s246, 2
          %s248 = scalar_lea.vmem [#allocation8], %s247
          %s249 = smul.u32 2, %s18
          %251 = vsyncadd %s245, 0
          %s252 = scalar_lea.hbm %s3, %s249
          %s254 = sshll.u32 %s252, 4
          %s255 = int_to_ptr.hbm [resolvable:$true] %s254
          %s256 = sshll.u32 %s248, 4
          %s257 = int_to_ptr.vmem [resolvable:$true] %s256
          %259 = dma.hbm_to_vmem [thread:$0]  %s255, 32, %s257, %s245
        $region32: #{tpu_custom_call.1} parent=19 // pred_fallthru
          _
        // Predicated region
        $region33: #{tpu_custom_call.1} parent=19 // pred_check
          %p260 = pneg %p137
        $region34: #{tpu_custom_call.1} parent=19 // pred_check_branch
          %262 = sbr.rel (%p260) target = $region36
        $region35: #{tpu_custom_call.1} parent=19 // pred_region
          %s263 = sand.u32 %s18, 1
          %s264 = scalar_lea.sflag [#allocation3], %s263
          %s265 = sand.u32 %s127, 1
          %s266 = smul.addr %s265, 2
          %s267 = scalar_lea.vmem [#allocation9], %s266
          %s268 = smul.u32 2, %s18
          %270 = vsyncadd %s264, 0
          %s271 = scalar_lea.hbm %s4, %s268
          %s273 = sshll.u32 %s271, 4
          %s274 = int_to_ptr.hbm [resolvable:$true] %s273
          %s275 = sshll.u32 %s267, 4
          %s276 = int_to_ptr.vmem [resolvable:$true] %s275
          %278 = dma.hbm_to_vmem [thread:$0]  %s274, 32, %s276, %s264
        $region36: #{tpu_custom_call.1} parent=19 // pred_fallthru
          _
      $region20: #{tpu_custom_call.1} parent=5 // pred_fallthru
        _
      %p279 = scmp.le.s32.totalorder 1, %s18
      %p280 = scmp.lt.s32.totalorder %s18, 3
      %p281 = pnand %p279, %p280
      %p282 = pneg %p281
      // Predicated region
      $region37: #{tpu_custom_call.1} parent=5 // pred_check
        _
      $region38: #{tpu_custom_call.1} parent=5 // pred_check_branch
        %284 = sbr.rel (%p281) target = $region40
      $region39: #{tpu_custom_call.1} parent=5 // pred_region
        %s285 = ssub.s32 %s18, 1
        %s286 = sand.u32 %s23, 1
        %s287 = scalar_lea.sflag [#allocation3], %s286
        %s288 = sand.u32 %s31, 1
        %s289 = smul.addr %s288, 8
        %s290 = scalar_lea.vmem [#allocation2], %s289
        // Predicated region
        $region41: #{tpu_custom_call.1} parent=39 // pred_check
          %p291 = pneg %p44
        $region42: #{tpu_custom_call.1} parent=39 // pred_check_branch
          %293 = sbr.rel (%p291) target = $region44
        $region43: #{tpu_custom_call.1} parent=39 // pred_region
          %295 = dma.done %s287, 128
        $region44: #{tpu_custom_call.1} parent=39 // pred_fallthru
          _
        // Predicated region
        $region45: #{tpu_custom_call.1} parent=39 // pred_check
          %p296 = pneg %p65
        $region46: #{tpu_custom_call.1} parent=39 // pred_check_branch
          %298 = sbr.rel (%p296) target = $region48
        $region47: #{tpu_custom_call.1} parent=39 // pred_region
          %300 = dma.done [#allocation6], 128
        $region48: #{tpu_custom_call.1} parent=39 // pred_fallthru
          _
        %s301 = sand.u32 %s23, 1
        %s302 = scalar_lea.sflag [#allocation3], %s301
        %s303 = sand.u32 %s78, 1
        %s304 = smul.addr %s303, 64
        %s305 = scalar_lea.vmem [#allocation7], %s304
        // Predicated region
        $region49: #{tpu_custom_call.1} parent=39 // pred_check
          %p306 = pneg %p91
        $region50: #{tpu_custom_call.1} parent=39 // pred_check_branch
          %308 = sbr.rel (%p306) target = $region52
        $region51: #{tpu_custom_call.1} parent=39 // pred_region
          %310 = dma.done %s302, 1024
        $region52: #{tpu_custom_call.1} parent=39 // pred_fallthru
          _
        %s311 = sand.u32 %s23, 1
        %s312 = scalar_lea.sflag [#allocation3], %s311
        %s313 = sand.u32 %s104, 1
        %s314 = smul.addr %s313, 2
        %s315 = scalar_lea.vmem [#allocation8], %s314
        // Predicated region
        $region53: #{tpu_custom_call.1} parent=39 // pred_check
          %p316 = pneg %p117
        $region54: #{tpu_custom_call.1} parent=39 // pred_check_branch
          %318 = sbr.rel (%p316) target = $region56
        $region55: #{tpu_custom_call.1} parent=39 // pred_region
          %320 = dma.done %s312, 32
        $region56: #{tpu_custom_call.1} parent=39 // pred_fallthru
          _
        %s321 = sand.u32 %s23, 1
        %s322 = scalar_lea.sflag [#allocation3], %s321
        %s323 = sand.u32 %s130, 1
        %s324 = smul.addr %s323, 2
        %s325 = scalar_lea.vmem [#allocation9], %s324
        // Predicated region
        $region57: #{tpu_custom_call.1} parent=39 // pred_check
          %p326 = pneg %p143
        $region58: #{tpu_custom_call.1} parent=39 // pred_check_branch
          %328 = sbr.rel (%p326) target = $region60
        $region59: #{tpu_custom_call.1} parent=39 // pred_region
          %330 = dma.done %s322, 32
        $region60: #{tpu_custom_call.1} parent=39 // pred_fallthru
          _
        %s331 = sand.u32 %s23, 1
        %s332 = scalar_lea.sflag [#allocation3], %s331
        %s333 = sand.u32 %s31, 1
        %s334 = smul.addr %s333, 8
        %s335 = scalar_lea.vmem [#allocation2], %s334
        %p336 = pneg %p44
        %p337 = pneg %p41
        %p338 = pneg %p65
        %p339 = pneg %p62
        %s340 = sand.u32 %s23, 1
        %s341 = scalar_lea.sflag [#allocation3], %s340
        %s342 = sand.u32 %s78, 1
        %s343 = smul.addr %s342, 64
        %s344 = scalar_lea.vmem [#allocation7], %s343
        %p345 = pneg %p91
        %p346 = pneg %p88
        %s347 = sand.u32 %s23, 1
        %s348 = scalar_lea.sflag [#allocation3], %s347
        %s349 = sand.u32 %s104, 1
        %s350 = smul.addr %s349, 2
        %s351 = scalar_lea.vmem [#allocation8], %s350
        %p352 = pneg %p117
        %p353 = pneg %p114
        %s354 = sand.u32 %s23, 1
        %s355 = scalar_lea.sflag [#allocation3], %s354
        %s356 = sand.u32 %s130, 1
        %s357 = smul.addr %s356, 2
        %s358 = scalar_lea.vmem [#allocation9], %s357
        %p359 = pneg %p143
        %p360 = pneg %p140
        %p361 = pneg %p169
        %p362 = pneg %p166
        %s363 = sand.u32 %s156, 1
        %s364 = scalar_lea.sflag [#allocation4], %s363
        %s365 = sand.u32 %s156, 1
        %s366 = smul.addr %s365, 8
        %s367 = scalar_lea.vmem [#allocation10], %s366
        %s368 = smul.u32 2, %s23
        %s369 = smul.u32 2, %s23
        %s370 = smul.u32 2, %s23
        %v371 = vld [vmem:[%s290] sm:$0xff]
        %v372 = vld [vmem:[#allocation5] sm:$0xff]
        %v373 = vld [vmem:[%s305] sm:$0xff]
        %v374 = vld [vmem:[%s305 + $0x8] sm:$0xff]
        %v375 = vld [vmem:[%s305 + $0x10] sm:$0xff]
        %v376 = vld [vmem:[%s305 + $0x18] sm:$0xff]
        %v377 = vld [vmem:[%s305 + $0x20] sm:$0xff]
        %v378 = vld [vmem:[%s305 + $0x28] sm:$0xff]
        %v379 = vld [vmem:[%s305 + $0x30] sm:$0xff]
        %v380 = vld [vmem:[%s305 + $0x38] sm:$0xff]
        %vm381 = vcmask 261120
        %v383 = vsel %vm381, %v372, 0
        %385 = vmatpush.msra.mxu0 0.0
        %386 = vmatpush.msra.mxu0 0.0
        %387 = vmatpush.msra.mxu0 0.0
        %388 = vmatpush.msra.mxu0 0.0
        %389 = vmatpush.msra.mxu0 0.0
        %390 = vmatpush.msra.mxu0 0.0
        %391 = vmatpush.msra.mxu0 0.0
        %392 = vmatpush.msra.mxu0 0.0
        %393 = vmatpush.msra.mxu0 0.0
        %394 = vmatpush.msra.mxu0 0.0
        %395 = vmatpush.msra.mxu0 0.0
        %396 = vmatpush.msra.mxu0 0.0
        %397 = vmatpush.msra.mxu0 %v379
        %398 = vmatpush.msra.mxu0 %v377
        %399 = vmatpush.msra.mxu0 %v375
        %400 = vmatpush.msra.mxu0 %v373
        %401 = vmatmul.f32.gmra.mxu0 %v383
        %v402 = vpop.f32.mrf.mxu0
        %v403 = vadd.f32 0.0, %v402
        %404 = vdwg.mxu0
        %405 = vmatpush.msra.mxu0 0.0
        %406 = vmatpush.msra.mxu0 0.0
        %407 = vmatpush.msra.mxu0 0.0
        %408 = vmatpush.msra.mxu0 0.0
        %409 = vmatpush.msra.mxu0 0.0
        %410 = vmatpush.msra.mxu0 0.0
        %411 = vmatpush.msra.mxu0 0.0
        %412 = vmatpush.msra.mxu0 0.0
        %413 = vmatpush.msra.mxu0 0.0
        %414 = vmatpush.msra.mxu0 0.0
        %415 = vmatpush.msra.mxu0 0.0
        %416 = vmatpush.msra.mxu0 0.0
        %417 = vmatpush.msra.mxu0 %v380
        %418 = vmatpush.msra.mxu0 %v378
        %419 = vmatpush.msra.mxu0 %v376
        %420 = vmatpush.msra.mxu0 %v374
        %421 = vmatmul.f32.gmra.mxu0 %v383
        %v422 = vpop.f32.mrf.mxu0
        %v423 = vadd.f32 0.0, %v422
        %424 = vdwg.mxu0
        %v425 = vrot.slane %v403, 4
        %v426 = vadd.f32 %v403, %v425
        %v427 = vrot.slane %v426, 2
        %v428 = vadd.f32 %v426, %v427
        %v429 = vrot.slane %v428, 1
        %v430 = vadd.f32 %v428, %v429
        %v431 = vrot.slane %v423, 4
        %v432 = vadd.f32 %v423, %v431
        %v433 = vrot.slane %v432, 2
        %v434 = vadd.f32 %v432, %v433
        %v435 = vrot.slane %v434, 1
        %v436 = vadd.f32 %v434, %v435
        %v437 = vrcp.pop 8.0
        %v438 = vmul.f32 8.0, %v437
        %v439 = vsub.f32 1.0, %v438
        %v440 = vmul.f32 %v437, %v439
        %v441 = vadd.f32 %v437, %v440
        %vm442 = vweird.f32 %v437
        %v443 = vsel %vm442, %v437, %v441
        %v444 = vmul.f32 %v430, %v443
        %v445 = vmul.f32 %v436, %v443
        %v446 = vsub.f32 %v403, %v444
        %v447 = vsub.f32 %v423, %v445
        %v448 = vmul.f32 %v446, %v446
        %v449 = vmul.f32 %v447, %v447
        %v450 = vrot.slane %v448, 4
        %v451 = vadd.f32 %v448, %v450
        %v452 = vrot.slane %v451, 2
        %v453 = vadd.f32 %v451, %v452
        %v454 = vrot.slane %v453, 1
        %v455 = vadd.f32 %v453, %v454
        %v456 = vrot.slane %v449, 4
        %v457 = vadd.f32 %v449, %v456
        %v458 = vrot.slane %v457, 2
        %v459 = vadd.f32 %v457, %v458
        %v460 = vrot.slane %v459, 1
        %v461 = vadd.f32 %v459, %v460
        %v462 = vmul.f32 %v455, %v443
        %v463 = vmul.f32 %v461, %v443
        %v464 = vld [vmem:[%s315] sm:$0x3]
        %v465 = vadd.f32 %v462, 1e-05
        %v466 = vadd.f32 %v463, 1e-05
        %v467 = vrsqrt.pop %v465
        %v468 = vmul.f32 %v467, %v465
        %v469 = vmul.f32 %v468, %v467
        %v470 = vmul.f32 0.5, %v469
        %v471 = vsub.f32 1.5, %v470
        %v472 = vmul.f32 %v467, %v471
        %vm473 = vweird.f32 %v465
        %vm474 = vweird.f32 %v467
        %vm475 = vmor %vm473, %vm474
        %v476 = vsel %vm475, %v467, %v472
        %v477 = vrsqrt.pop %v466
        %v478 = vmul.f32 %v477, %v466
        %v479 = vmul.f32 %v478, %v477
        %v480 = vmul.f32 0.5, %v479
        %v481 = vsub.f32 1.5, %v480
        %v482 = vmul.f32 %v477, %v481
        %vm483 = vweird.f32 %v466
        %vm484 = vweird.f32 %v477
        %vm485 = vmor %vm483, %vm484
        %v486 = vsel %vm485, %v477, %v482
        %v489 = vrot.slane %v486, 7
        %vm490 = vcmask 1040384
        %v491 = vsel %vm490, %v476, %v489
        %v493 = vmul.f32 %v464, %v491
        %v495 = vperm.slane %v493, 0
        %v496 = vperm.slane %v493, 1
        %v499 = vmul.f32 %v446, %v495
        %v500 = vmul.f32 %v447, %v496
        %v501 = vld [vmem:[%s325] sm:$0x3]
        %v503 = vperm.slane %v501, 0
        %v504 = vperm.slane %v501, 1
        %v507 = vadd.f32 %v499, %v503
        %v508 = vadd.f32 %v500, %v504
        %v509 = vadd.f32 %v371, %v507
        %v510 = vtanh.pop %v509
        %v511 = vadd.f32 %v508, %v371
        %v512 = vxor.u32 %v511, 2147483648
        %v513 = vmul.f32 %v512, 1.442695
        %v514 = vpow.pop %v513
        %v515 = vadd.f32 %v514, 1.0
        %v516 = vrcp.pop %v515
        %v517 = vmul.f32 %v515, %v516
        %v518 = vsub.f32 1.0, %v517
        %v519 = vmul.f32 %v516, %v518
        %v520 = vadd.f32 %v516, %v519
        %vm521 = vweird.f32 %v515
        %vm522 = vweird.f32 %v516
        %vm523 = vmor %vm521, %vm522
        %v524 = vsel %vm523, %v516, %v520
        %v525 = vand.u32 2147483647, %v515
        %vm526 = vcmp.eq.f32.partialorder %v525, 8.507059e+37
        %v527 = vand.u32 %v515, 2147483648
        %v528 = vor.u32 1.1754944e-38, %v527
        %v529 = vsel %vm526, %v528, %v524
        %v530 = vmul.f32 1.0, %v529
        %v531 = vxor.u32 %v507, 2147483648
        %v532 = vmul.f32 %v531, 1.442695
        %v533 = vpow.pop %v532
        %v534 = vadd.f32 %v533, 1.0
        %v535 = vrcp.pop %v534
        %v536 = vmul.f32 %v534, %v535
        %v537 = vsub.f32 1.0, %v536
        %v538 = vmul.f32 %v535, %v537
        %v539 = vadd.f32 %v535, %v538
        %vm540 = vweird.f32 %v534
        %vm541 = vweird.f32 %v535
        %vm542 = vmor %vm540, %vm541
        %v543 = vsel %vm542, %v535, %v539
        %v544 = vand.u32 2147483647, %v534
        %vm545 = vcmp.eq.f32.partialorder %v544, 8.507059e+37
        %v546 = vand.u32 %v534, 2147483648
        %v547 = vor.u32 1.1754944e-38, %v546
        %v548 = vsel %vm545, %v547, %v543
        %v549 = vmul.f32 1.0, %v548
        %v550 = vmul.f32 %v549, %v530
        %v551 = vsub.f32 1.0, %v550
        %v552 = vmul.f32 %v551, %v371
        %v553 = vmul.f32 %v550, %v510
        %v554 = vadd.f32 %v552, %v553
        %555 = vst [vmem:[%s367] sm:$0xff] %v554
        %s556 = sand.u32 %s156, 1
        %s557 = scalar_lea.sflag [#allocation4], %s556
        %s558 = sand.u32 %s156, 1
        %s559 = smul.addr %s558, 8
        %s560 = scalar_lea.vmem [#allocation10], %s559
        // Predicated region
        $region61: #{tpu_custom_call.1} parent=39 // pred_check
          %p561 = pneg %p166
        $region62: #{tpu_custom_call.1} parent=39 // pred_check_branch
          %563 = sbr.rel (%p561) target = $region64
        $region63: #{tpu_custom_call.1} parent=39 // pred_region
          %565 = vsyncadd %s557, 0
          %s566 = smul.addr %s23, 8
          %s567 = scalar_lea.hbm %s5, %s566
          %s569 = sshll.u32 %s560, 4
          %s570 = int_to_ptr.vmem [resolvable:$true] %s569
          %s571 = sshll.u32 %s567, 4
          %s572 = int_to_ptr.hbm [resolvable:$true] %s571
          %574 = dma.vmem_to_hbm [thread:$0]  %s570, 128, %s572, %s557
        $region64: #{tpu_custom_call.1} parent=39 // pred_fallthru
          _
      $region40: #{tpu_custom_call.1} parent=5 // pred_fallthru
        _
      %p575 = scmp.le.s32.totalorder 2, %s18
      // Predicated region
      $region65: #{tpu_custom_call.1} parent=5 // pred_check
        %p576 = pneg %p575
      $region66: #{tpu_custom_call.1} parent=5 // pred_check_branch
        %578 = sbr.rel (%p576) target = $region68
      $region67: #{tpu_custom_call.1} parent=5 // pred_region
        %s579 = ssub.s32 %s18, 2
        // Predicated region
        $region69: #{tpu_custom_call.1} parent=67 // pred_check
          %p580 = pneg %p172
        $region70: #{tpu_custom_call.1} parent=67 // pred_check_branch
          %582 = sbr.rel (%p580) target = $region72
        $region71: #{tpu_custom_call.1} parent=67 // pred_region
          %s583 = sand.u32 %s157, 1
          %s584 = scalar_lea.sflag [#allocation4], %s583
          %s585 = sand.u32 %s157, 1
          %s586 = smul.addr %s585, 8
          %s587 = scalar_lea.vmem [#allocation10], %s586
          %589 = dma.done %s584, 128
        $region72: #{tpu_custom_call.1} parent=67 // pred_fallthru
          _
      $region68: #{tpu_custom_call.1} parent=5 // pred_fallthru
        _
    $region6: #{tpu_custom_call.1} parent=1 // loop_footer
      %s22 = sadd.s32 1, %s18
    $region7: #{tpu_custom_call.1} parent=1 // loop_footer_branch
      %17 = sbr.rel target = $region3
    $region8: #{tpu_custom_call.1} parent=1 // loop_exit
      _
    %590 = vsyncpa [#allocation3], 1
    %s591 = scalar_lea.sflag [#allocation3], 1
    %592 = vsyncpa %s591, 1
    %593 = vsyncpa [#allocation6], 1
    %594 = vsyncpa [#allocation4], 1
    %s595 = scalar_lea.sflag [#allocation4], 1
    %596 = vsyncpa %s595, 1

</llo_original>
